<compile_context>
chip_gen: v6e
topology: v6e:2x2x1
jax: 0.10.0
libtpu: 0.0.40
codegen_flags: <defaults>
</compile_context>

<pallas_src>
import functools

import jax
import jax.numpy as jnp
from jax.experimental import pallas as pl
from jax.experimental.pallas import tpu as pltpu


def _round_up(x, m):
    return ((x + m - 1) // m) * m


def _iter_reg_kernel(feat_ref, mean_ref, w1f_ref, w1c_ref, b1_ref, w2_ref,
                     b2_ref, out_ref, fp_ref):
    """One batch-tile of the fused iterative regression.

    out[s] = params after stage s.  cond is carried in f32 vregs; the
    stage-invariant projection feat @ W1_f + b1 lives in VMEM scratch fp_ref.
    """
    w1c = w1c_ref[...]                         # [P, H]  (bf16)
    w2 = w2_ref[...]                           # [H, P]  (bf16)
    mxu_dtype = w1c.dtype
    b2 = b2_ref[...].astype(jnp.float32)       # [1, P]

    # Stage-invariant projection, computed once (features never change).
    fp_ref[...] = (
        jnp.dot(feat_ref[...], w1f_ref[...],
                preferred_element_type=jnp.float32)
        + b1_ref[...].astype(jnp.float32))     # [tile_b, H] f32

    tile_b = feat_ref.shape[0]
    p = mean_ref.shape[-1]
    num_stages = out_ref.shape[0]

    # cond = mean_param.expand(batch, -1); broadcast in-kernel, kept in f32.
    cond = jnp.broadcast_to(mean_ref[...].astype(jnp.float32), (tile_b, p))

    # Small, static stage count -> unrolled; cond stays resident.
    # TODO(synk): switch to lax.fori_loop(..., unroll=True) if num_stages > ~4.
    for s in range(num_stages):
        h = jnp.maximum(
            fp_ref[...]
            + jnp.dot(cond.astype(mxu_dtype), w1c,
                      preferred_element_type=jnp.float32),
            0.0)
        delta = jnp.dot(h.astype(mxu_dtype), w2,
                        preferred_element_type=jnp.float32) + b2
        cond = cond + delta                    # parameters[s]
        out_ref[s] = cond


def prepare_params(mean_param, w1_f, w1_c, b1, w2, b2, *,
                   mxu_dtype=jnp.bfloat16):
    """One-time padding + dtype preparation of the regressor parameters.

    Call ONCE at module-construction time (outside the per-call jit path).
    Padded rows/columns are zero, which keeps padded cond lanes exactly zero
    through all stages (zeros are exact in bf16)."""
    F, H = w1_f.shape
    P = w1_c.shape[0]
    Fp, Hp, Pp = _round_up(F, 128), _round_up(H, 128), _round_up(P, 128)

    def pad2(x, r, c):
        if x.shape == (r, c):
            return x
        return jnp.pad(x, ((0, r - x.shape[0]), (0, c - x.shape[1])))

    mean_p = pad2(mean_param, 1, Pp).astype(jnp.float32)   # accumulated in f32
    w1f_p = pad2(w1_f, Fp, Hp).astype(mxu_dtype)
    w1c_p = pad2(w1_c, Pp, Hp).astype(mxu_dtype)
    b1_p = pad2(b1, 1, Hp).astype(jnp.float32)
    w2_p = pad2(w2, Hp, Pp).astype(mxu_dtype)
    b2_p = pad2(b2, 1, Pp).astype(jnp.float32)
    return mean_p, w1f_p, w1c_p, b1_p, w2_p, b2_p


@functools.partial(jax.jit, static_argnames=("num_stages", "param_dim"))
def iterative_regression(features, mean_p, w1f_p, w1c_p, b1_p, w2_p, b2_p,
                         *, num_stages, param_dim):
    """Pallas implementation of IterativeRegression.forward.

    features : [B, F] float32; remaining args come from prepare_params().
    Returns a stacked [num_stages, B, param_dim] float32 array
    (stage s == `parameters[s]` of the torch module)."""
    B, F = features.shape
    Fp, Hp = w1f_p.shape
    Pp = w1c_p.shape[0]
    mxu_dtype = w1f_p.dtype

    # Batch tiling: single block at small batch; 256-row blocks at real batch
    # sizes (fills the 256-wide MXU on v6e/v7x; also fine on v5e's 128).
    tile_b = _round_up(B, 8) if B <= 256 else 256
    Bp = _round_up(B, tile_b)

    feat = features.astype(mxu_dtype)
    if feat.shape != (Bp, Fp):                 # only pad when misaligned
        feat = jnp.pad(feat, ((0, Bp - B), (0, Fp - F)))

    grid = (Bp // tile_b,)

    # VMEM budget: resident weights + double-buffered feat/out tiles + scratch.
    isz = jnp.dtype(mxu_dtype).itemsize
    weight_bytes = (Fp * Hp + Pp * Hp + Hp * Pp) * isz + (Hp + 2 * Pp + Pp) * 4
    feat_tile_bytes = 2 * tile_b * Fp * isz
    out_tile_bytes = 2 * num_stages * tile_b * Pp * 4
    scratch_bytes = tile_b * Hp * 4
    vmem_bytes = int(1.5 * (weight_bytes + feat_tile_bytes + out_tile_bytes
                            + scratch_bytes)) + (2 << 20)
    vmem_bytes = min(max(vmem_bytes, 4 << 20), 96 << 20)

    out = pl.pallas_call(
        _iter_reg_kernel,
        out_shape=jax.ShapeDtypeStruct((num_stages, Bp, Pp), jnp.float32),
        grid=grid,
        in_specs=[
            pl.BlockSpec((tile_b, Fp), lambda i: (i, 0)),   # features: tiled
            pl.BlockSpec((1, Pp), lambda i: (0, 0)),        # mean: resident
            pl.BlockSpec((Fp, Hp), lambda i: (0, 0)),       # w1_f: resident
            pl.BlockSpec((Pp, Hp), lambda i: (0, 0)),       # w1_c: resident
            pl.BlockSpec((1, Hp), lambda i: (0, 0)),        # b1:   resident
            pl.BlockSpec((Hp, Pp), lambda i: (0, 0)),       # w2:   resident
            pl.BlockSpec((1, Pp), lambda i: (0, 0)),        # b2:   resident
        ],
        out_specs=pl.BlockSpec((num_stages, tile_b, Pp), lambda i: (0, i, 0)),
        scratch_shapes=[pltpu.VMEM((tile_b, Hp), jnp.float32)],
        compiler_params=pltpu.CompilerParams(
            dimension_semantics=("parallel",),
            vmem_limit_bytes=vmem_bytes),
    )(feat, mean_p, w1f_p, w1c_p, b1_p, w2_p, b2_p)

    # Single stacked slice (one post-kernel op), not per-stage slices.
    return out[:, :B, :param_dim]


def _init_params(key, feat_dim, param_dim, hidden_dim):
    """Deterministic synthetic init for the inner MLP + mean param."""
    k1, k2, k3, k4 = jax.random.split(key, 4)
    in_dim = feat_dim + param_dim
    scale1 = 1.0 / jnp.sqrt(jnp.float32(in_dim))
    scale2 = 1.0 / jnp.sqrt(jnp.float32(hidden_dim))
    w1 = jax.random.normal(k1, (in_dim, hidden_dim), jnp.float32) * scale1
    b1 = jax.random.normal(k2, (1, hidden_dim), jnp.float32) * 0.01
    w2 = jax.random.normal(k3, (hidden_dim, param_dim), jnp.float32) * scale2
    b2 = jax.random.normal(k4, (1, param_dim), jnp.float32) * 0.01
    # Split W1 into the part that multiplies `features` and the part that
    # multiplies the appended parameters (exactly equivalent to concat).
    w1_f = w1[:feat_dim]
    w1_c = w1[feat_dim:]
    return w1_f, w1_c, b1, w2, b2


def _reference(features, mean_param, w1_f, w1_c, b1, w2, b2, num_stages):
    """Pure-JAX f32 reference matching the PyTorch forward semantics."""
    B = features.shape[0]
    P = mean_param.shape[-1]
    cond = jnp.broadcast_to(mean_param, (B, P))
    w1 = jnp.concatenate([w1_f, w1_c], axis=0)
    params = []
    for _ in range(num_stages):
        x = jnp.concatenate([features, cond], axis=1)
        h = jnp.maximum(x @ w1 + b1, 0.0)
        delta = h @ w2 + b2
        cond = cond + delta
        params.append(cond)
    return params


if __name__ == "__main__":
    B, F, P, H = 2, 32, 16, 32
    NUM_STAGES = 3

    key = jax.random.PRNGKey(0)
    k_feat, k_mean, k_mlp = jax.random.split(key, 3)

    features = jax.random.normal(k_feat, (B, F), jnp.float32)
    mean_param = jax.random.normal(k_mean, (1, P), jnp.float32) * 0.1
    w1_f, w1_c, b1, w2, b2 = _init_params(k_mlp, F, P, H)

    # One-time parameter preparation (padding + bf16 cast), off the hot path.
    prepared = prepare_params(mean_param, w1_f, w1_c, b1, w2, b2)

    out = iterative_regression(features, *prepared,
                               num_stages=NUM_STAGES, param_dim=P)
    out = jax.block_until_ready(out)

    refs = _reference(features, mean_param, w1_f, w1_c, b1, w2, b2, NUM_STAGES)
    assert out.shape == (NUM_STAGES, B, P)
    # bf16 MXU operands -> loosened tolerance vs. the pure-f32 reference.
    for s in range(NUM_STAGES):
        assert jnp.allclose(out[s], refs[s], atol=5e-2, rtol=5e-2), \
            f"stage {s} mismatch"

    print("KERNEL_OK")
</pallas_src>

<mosaic_0001>
module attributes {stable_mosaic.version = 11 : i64} {
  func.func @_iter_reg_kernel(%arg0: i32, %arg1: memref<8x128xbf16, #tpu.memory_space<vmem>>, %arg2: memref<1x128xf32, #tpu.memory_space<vmem>>, %arg3: memref<128x128xbf16, #tpu.memory_space<vmem>>, %arg4: memref<128x128xbf16, #tpu.memory_space<vmem>>, %arg5: memref<1x128xf32, #tpu.memory_space<vmem>>, %arg6: memref<128x128xbf16, #tpu.memory_space<vmem>>, %arg7: memref<1x128xf32, #tpu.memory_space<vmem>>, %arg8: memref<3x8x128xf32, #tpu.memory_space<vmem>>, %arg9: memref<8x128xf32, #tpu.memory_space<vmem>>) attributes {dimension_semantics = [#tpu.dimension_semantics<parallel>], iteration_bounds = array<i64: 1>, scalar_prefetch = 0 : i64, scratch_operands = 1 : i64, tpu.core_type = #tpu.core_type<tc>, window_params = [{transform_indices = @transform_0, window_bounds = array<i64: 8, 128>}, {pipeline_mode = #tpu.pipeline_mode<synchronous>, transform_indices = @transform_1, window_bounds = array<i64: 1, 128>}, {pipeline_mode = #tpu.pipeline_mode<synchronous>, transform_indices = @transform_2, window_bounds = array<i64: 128, 128>}, {pipeline_mode = #tpu.pipeline_mode<synchronous>, transform_indices = @transform_3, window_bounds = array<i64: 128, 128>}, {pipeline_mode = #tpu.pipeline_mode<synchronous>, transform_indices = @transform_4, window_bounds = array<i64: 1, 128>}, {pipeline_mode = #tpu.pipeline_mode<synchronous>, transform_indices = @transform_5, window_bounds = array<i64: 128, 128>}, {pipeline_mode = #tpu.pipeline_mode<synchronous>, transform_indices = @transform_6, window_bounds = array<i64: 1, 128>}, {transform_indices = @transform_7, window_bounds = array<i64: 3, 8, 128>}]} {
    %c0 = arith.constant 0 : index
    %c0_0 = arith.constant 0 : index
    %0 = vector.load %arg4[%c0, %c0_0] : memref<128x128xbf16, #tpu.memory_space<vmem>>, vector<128x128xbf16>
    %c0_1 = arith.constant 0 : index
    %c0_2 = arith.constant 0 : index
    %1 = vector.load %arg6[%c0_1, %c0_2] : memref<128x128xbf16, #tpu.memory_space<vmem>>, vector<128x128xbf16>
    %c0_3 = arith.constant 0 : index
    %c0_4 = arith.constant 0 : index
    %2 = vector.load %arg7[%c0_3, %c0_4] : memref<1x128xf32, #tpu.memory_space<vmem>>, vector<1x128xf32>
    %c0_5 = arith.constant 0 : index
    %c0_6 = arith.constant 0 : index
    %3 = vector.load %arg1[%c0_5, %c0_6] : memref<8x128xbf16, #tpu.memory_space<vmem>>, vector<8x128xbf16>
    %c0_7 = arith.constant 0 : index
    %c0_8 = arith.constant 0 : index
    %4 = vector.load %arg3[%c0_7, %c0_8] : memref<128x128xbf16, #tpu.memory_space<vmem>>, vector<128x128xbf16>
    %cst = arith.constant dense<0.000000e+00> : vector<8x128xf32>
    %5 = tpu.matmul %3, %4, %cst {dimension_numbers = #tpu.dot_dimension_numbers<[1], [0], [0], [1], [0, 0, 1, 1], [], []>} : vector<8x128xbf16>, vector<128x128xbf16>, vector<8x128xf32> -> vector<8x128xf32>
    %c0_9 = arith.constant 0 : index
    %c0_10 = arith.constant 0 : index
    %6 = vector.load %arg5[%c0_9, %c0_10] : memref<1x128xf32, #tpu.memory_space<vmem>>, vector<1x128xf32>
    %7 = vector.broadcast %6 : vector<1x128xf32> to vector<8x128xf32>
    %8 = arith.addf %5, %7 : vector<8x128xf32>
    %c0_11 = arith.constant 0 : index
    %c0_12 = arith.constant 0 : index
    %9 = vector.load %arg9[%c0_11, %c0_12] : memref<8x128xf32, #tpu.memory_space<vmem>>, vector<8x128xf32>
    tpu.vector_store %arg9[%c0_11, %c0_12], %8 {strides = array<i32>} : memref<8x128xf32, #tpu.memory_space<vmem>>, vector<8x128xf32>,
    %c0_13 = arith.constant 0 : index
    %c0_14 = arith.constant 0 : index
    %10 = vector.load %arg2[%c0_13, %c0_14] : memref<1x128xf32, #tpu.memory_space<vmem>>, vector<1x128xf32>
    %11 = vector.shape_cast %10 : vector<1x128xf32> to vector<1x128xf32>
    %12 = vector.broadcast %11 : vector<1x128xf32> to vector<8x128xf32>
    %c0_15 = arith.constant 0 : index
    %c0_16 = arith.constant 0 : index
    %13 = vector.load %arg9[%c0_15, %c0_16] : memref<8x128xf32, #tpu.memory_space<vmem>>, vector<8x128xf32>
    %14 = arith.truncf %12 : vector<8x128xf32> to vector<8x128xbf16>
    %cst_17 = arith.constant dense<0.000000e+00> : vector<8x128xf32>
    %15 = tpu.matmul %14, %0, %cst_17 {dimension_numbers = #tpu.dot_dimension_numbers<[1], [0], [0], [1], [0, 0, 1, 1], [], []>} : vector<8x128xbf16>, vector<128x128xbf16>, vector<8x128xf32> -> vector<8x128xf32>
    %16 = arith.addf %13, %15 : vector<8x128xf32>
    %cst_18 = arith.constant 0.000000e+00 : f32
    %17 = vector.broadcast %cst_18 : f32 to vector<8x128xf32>
    %18 = arith.maximumf %16, %17 : vector<8x128xf32>
    %19 = arith.truncf %18 : vector<8x128xf32> to vector<8x128xbf16>
    %cst_19 = arith.constant dense<0.000000e+00> : vector<8x128xf32>
    %20 = tpu.matmul %19, %1, %cst_19 {dimension_numbers = #tpu.dot_dimension_numbers<[1], [0], [0], [1], [0, 0, 1, 1], [], []>} : vector<8x128xbf16>, vector<128x128xbf16>, vector<8x128xf32> -> vector<8x128xf32>
    %21 = vector.broadcast %2 : vector<1x128xf32> to vector<8x128xf32>
    %22 = arith.addf %20, %21 : vector<8x128xf32>
    %23 = arith.addf %12, %22 : vector<8x128xf32>
    %c0_20 = arith.constant 0 : index
    %c0_21 = arith.constant 0 : index
    %c0_22 = arith.constant 0 : index
    %24 = vector.load %arg8[%c0_20, %c0_21, %c0_22] : memref<3x8x128xf32, #tpu.memory_space<vmem>>, vector<1x8x128xf32>
    %25 = vector.shape_cast %24 : vector<1x8x128xf32> to vector<8x128xf32>
    %26 = vector.shape_cast %23 : vector<8x128xf32> to vector<1x8x128xf32>
    tpu.vector_store %arg8[%c0_20, %c0_21, %c0_22], %26 {strides = array<i32>} : memref<3x8x128xf32, #tpu.memory_space<vmem>>, vector<1x8x128xf32>,
    %c0_23 = arith.constant 0 : index
    %c0_24 = arith.constant 0 : index
    %27 = vector.load %arg9[%c0_23, %c0_24] : memref<8x128xf32, #tpu.memory_space<vmem>>, vector<8x128xf32>
    %28 = arith.truncf %23 : vector<8x128xf32> to vector<8x128xbf16>
    %cst_25 = arith.constant dense<0.000000e+00> : vector<8x128xf32>
    %29 = tpu.matmul %28, %0, %cst_25 {dimension_numbers = #tpu.dot_dimension_numbers<[1], [0], [0], [1], [0, 0, 1, 1], [], []>} : vector<8x128xbf16>, vector<128x128xbf16>, vector<8x128xf32> -> vector<8x128xf32>
    %30 = arith.addf %27, %29 : vector<8x128xf32>
    %cst_26 = arith.constant 0.000000e+00 : f32
    %31 = vector.broadcast %cst_26 : f32 to vector<8x128xf32>
    %32 = arith.maximumf %30, %31 : vector<8x128xf32>
    %33 = arith.truncf %32 : vector<8x128xf32> to vector<8x128xbf16>
    %cst_27 = arith.constant dense<0.000000e+00> : vector<8x128xf32>
    %34 = tpu.matmul %33, %1, %cst_27 {dimension_numbers = #tpu.dot_dimension_numbers<[1], [0], [0], [1], [0, 0, 1, 1], [], []>} : vector<8x128xbf16>, vector<128x128xbf16>, vector<8x128xf32> -> vector<8x128xf32>
    %35 = vector.broadcast %2 : vector<1x128xf32> to vector<8x128xf32>
    %36 = arith.addf %34, %35 : vector<8x128xf32>
    %37 = arith.addf %23, %36 : vector<8x128xf32>
    %c1 = arith.constant 1 : index
    %c0_28 = arith.constant 0 : index
    %c0_29 = arith.constant 0 : index
    %38 = vector.load %arg8[%c1, %c0_28, %c0_29] : memref<3x8x128xf32, #tpu.memory_space<vmem>>, vector<1x8x128xf32>
    %39 = vector.shape_cast %38 : vector<1x8x128xf32> to vector<8x128xf32>
    %40 = vector.shape_cast %37 : vector<8x128xf32> to vector<1x8x128xf32>
    tpu.vector_store %arg8[%c1, %c0_28, %c0_29], %40 {strides = array<i32>} : memref<3x8x128xf32, #tpu.memory_space<vmem>>, vector<1x8x128xf32>,
    %c0_30 = arith.constant 0 : index
    %c0_31 = arith.constant 0 : index
    %41 = vector.load %arg9[%c0_30, %c0_31] : memref<8x128xf32, #tpu.memory_space<vmem>>, vector<8x128xf32>
    %42 = arith.truncf %37 : vector<8x128xf32> to vector<8x128xbf16>
    %cst_32 = arith.constant dense<0.000000e+00> : vector<8x128xf32>
    %43 = tpu.matmul %42, %0, %cst_32 {dimension_numbers = #tpu.dot_dimension_numbers<[1], [0], [0], [1], [0, 0, 1, 1], [], []>} : vector<8x128xbf16>, vector<128x128xbf16>, vector<8x128xf32> -> vector<8x128xf32>
    %44 = arith.addf %41, %43 : vector<8x128xf32>
    %cst_33 = arith.constant 0.000000e+00 : f32
    %45 = vector.broadcast %cst_33 : f32 to vector<8x128xf32>
    %46 = arith.maximumf %44, %45 : vector<8x128xf32>
    %47 = arith.truncf %46 : vector<8x128xf32> to vector<8x128xbf16>
    %cst_34 = arith.constant dense<0.000000e+00> : vector<8x128xf32>
    %48 = tpu.matmul %47, %1, %cst_34 {dimension_numbers = #tpu.dot_dimension_numbers<[1], [0], [0], [1], [0, 0, 1, 1], [], []>} : vector<8x128xbf16>, vector<128x128xbf16>, vector<8x128xf32> -> vector<8x128xf32>
    %49 = vector.broadcast %2 : vector<1x128xf32> to vector<8x128xf32>
    %50 = arith.addf %48, %49 : vector<8x128xf32>
    %51 = arith.addf %37, %50 : vector<8x128xf32>
    %c2 = arith.constant 2 : index
    %c0_35 = arith.constant 0 : index
    %c0_36 = arith.constant 0 : index
    %52 = vector.load %arg8[%c2, %c0_35, %c0_36] : memref<3x8x128xf32, #tpu.memory_space<vmem>>, vector<1x8x128xf32>
    %53 = vector.shape_cast %52 : vector<1x8x128xf32> to vector<8x128xf32>
    %54 = vector.shape_cast %51 : vector<8x128xf32> to vector<1x8x128xf32>
    tpu.vector_store %arg8[%c2, %c0_35, %c0_36], %54 {strides = array<i32>} : memref<3x8x128xf32, #tpu.memory_space<vmem>>, vector<1x8x128xf32>,
    return
  }
  func.func @transform_0(%arg0: i32) -> (i32, i32) {
    %c0_i32 = arith.constant 0 : i32
    %c0_i32_0 = arith.constant 0 : i32
    return %arg0, %c0_i32 : i32, i32
  }
  func.func @transform_1(%arg0: i32) -> (i32, i32) {
    %c0_i32 = arith.constant 0 : i32
    %c0_i32_0 = arith.constant 0 : i32
    %c0_i32_1 = arith.constant 0 : i32
    return %c0_i32, %c0_i32_0 : i32, i32
  }
  func.func @transform_2(%arg0: i32) -> (i32, i32) {
    %c0_i32 = arith.constant 0 : i32
    %c0_i32_0 = arith.constant 0 : i32
    %c0_i32_1 = arith.constant 0 : i32
    return %c0_i32, %c0_i32_0 : i32, i32
  }
  func.func @transform_3(%arg0: i32) -> (i32, i32) {
    %c0_i32 = arith.constant 0 : i32
    %c0_i32_0 = arith.constant 0 : i32
    %c0_i32_1 = arith.constant 0 : i32
    return %c0_i32, %c0_i32_0 : i32, i32
  }
  func.func @transform_4(%arg0: i32) -> (i32, i32) {
    %c0_i32 = arith.constant 0 : i32
    %c0_i32_0 = arith.constant 0 : i32
    %c0_i32_1 = arith.constant 0 : i32
    return %c0_i32, %c0_i32_0 : i32, i32
  }
  func.func @transform_5(%arg0: i32) -> (i32, i32) {
    %c0_i32 = arith.constant 0 : i32
    %c0_i32_0 = arith.constant 0 : i32
    %c0_i32_1 = arith.constant 0 : i32
    return %c0_i32, %c0_i32_0 : i32, i32
  }
  func.func @transform_6(%arg0: i32) -> (i32, i32) {
    %c0_i32 = arith.constant 0 : i32
    %c0_i32_0 = arith.constant 0 : i32
    %c0_i32_1 = arith.constant 0 : i32
    return %c0_i32, %c0_i32_0 : i32, i32
  }
  func.func @transform_7(%arg0: i32) -> (i32, i32, i32) {
    %c0_i32 = arith.constant 0 : i32
    %c0_i32_0 = arith.constant 0 : i32
    %c0_i32_1 = arith.constant 0 : i32
    return %c0_i32, %arg0, %c0_i32_0 : i32, i32, i32
  }
}

</mosaic_0001>

<llo_original>
// kernel: iterative_regression.1
$region0: #{iterative_regression.1}
  #allocation0 [shape = 'u32[]', space=smem, size = 0x4, offset = 0x4, fixed_abs, tag = 'smem constant byte address 0x4 - core index']
  #allocation1 [shape = 'u32[144,128]{1,0:T(1,128)}', space=vmem, size = 0x12000, scoped, tag = 'internal scratch']
  #allocation2 [shape = 'f32[8,128]{1,0:T(8,128)}', space=vmem, size = 0x1000, scoped, tag = 'scratch operand']
  %s0 = inlined_call_operand.vmem [shape: bf16[8,128], index: 0, kind: input, shape index: {}]
  %s1 = inlined_call_operand.vmem [shape: f32[1,128], index: 1, kind: input, shape index: {}]
  %s2 = inlined_call_operand.hbm [shape: bf16[128,128], index: 2, kind: input, shape index: {}]
  %s3 = inlined_call_operand.hbm [shape: bf16[128,128], index: 3, kind: input, shape index: {}]
  %s4 = inlined_call_operand.vmem [shape: f32[1,128], index: 4, kind: input, shape index: {}]
  %s5 = inlined_call_operand.hbm [shape: bf16[128,128], index: 5, kind: input, shape index: {}]
  %s6 = inlined_call_operand.vmem [shape: f32[1,128], index: 6, kind: input, shape index: {}]
  %s7 = inlined_call_operand.vmem [shape: f32[3,8,128], index: 7, kind: output, shape index: {}]
  %s8 = sld [smem:[#allocation0]]
  $region50: #{iterative_regression.1} parent=0
    _
  %s10 = ssub.s32 1, %s8
  %s11 = scalar_select 0, %s10, %s8
  $region1: #{iterative_regression.1} parent=0
    #allocation3 [shape = 'u8[32768]{0}', space=vmem, size = 0x8000, scoped, tag = 'input window, operand 2, single buffered']
    #allocation4 [shape = 's32[1]{0}', space=sflag, size = 0x4, scoped, tag = 'scoped memory for iterative_regression.1']
    #allocation5 [shape = 'u8[32768]{0}', space=vmem, size = 0x8000, scoped, tag = 'input window, operand 3, single buffered']
    #allocation6 [shape = 's32[1]{0}', space=sflag, size = 0x4, scoped, tag = 'scoped memory for iterative_regression.1']
    #allocation7 [shape = 'u8[32768]{0}', space=vmem, size = 0x8000, scoped, tag = 'input window, operand 5, single buffered']
    %12 = vsyncpa [#allocation4], 0
    %13 = vsyncpa [#allocation6], 0
    // Predicated region
    $region2: #{iterative_regression.1} parent=1 // pred_check
      _
    $region3: #{iterative_regression.1} parent=1 // pred_check_branch
      %15 = sbr.rel (0) target = $region5
    $region4: #{iterative_regression.1} parent=1 // pred_region
      _
    $region5: #{iterative_regression.1} parent=1 // pred_fallthru
      _
    // Predicated region
    $region6: #{iterative_regression.1} parent=1 // pred_check
      _
    $region7: #{iterative_regression.1} parent=1 // pred_check_branch
      %17 = sbr.rel (0) target = $region9
    $region8: #{iterative_regression.1} parent=1 // pred_region
      _
    $region9: #{iterative_regression.1} parent=1 // pred_fallthru
      _
    // Predicated region
    $region10: #{iterative_regression.1} parent=1 // pred_check
      _
    $region11: #{iterative_regression.1} parent=1 // pred_check_branch
      %19 = sbr.rel (0) target = $region13
    $region12: #{iterative_regression.1} parent=1 // pred_region
      %s21 = ssub.s32 1024, 1024
      %22 = vsyncadd [#allocation4], %s21
      %s23 = sshll.u32 [#allocation3], 4
      %s24 = int_to_ptr.vmem [resolvable:$true] %s23
      %29 = dma.hbm_to_vmem [thread:$0]  %s2, 1024, %s24, [#allocation4], 64, 64, 4
    $region13: #{iterative_regression.1} parent=1 // pred_fallthru
      _
    // Predicated region
    $region14: #{iterative_regression.1} parent=1 // pred_check
      _
    $region15: #{iterative_regression.1} parent=1 // pred_check_branch
      %31 = sbr.rel (0) target = $region17
    $region16: #{iterative_regression.1} parent=1 // pred_region
      %s33 = ssub.s32 1024, 1024
      %34 = vsyncadd [#allocation6], %s33
      %s35 = sshll.u32 [#allocation5], 4
      %s36 = int_to_ptr.vmem [resolvable:$true] %s35
      %41 = dma.hbm_to_vmem [thread:$0]  %s3, 1024, %s36, [#allocation6], 64, 64, 4
    $region17: #{iterative_regression.1} parent=1 // pred_fallthru
      _
    // Predicated region
    $region18: #{iterative_regression.1} parent=1 // pred_check
      _
    $region19: #{iterative_regression.1} parent=1 // pred_check_branch
      %43 = sbr.rel (0) target = $region21
    $region20: #{iterative_regression.1} parent=1 // pred_region
      _
    $region21: #{iterative_regression.1} parent=1 // pred_fallthru
      _
    // Predicated region
    $region22: #{iterative_regression.1} parent=1 // pred_check
      _
    $region23: #{iterative_regression.1} parent=1 // pred_check_branch
      %45 = sbr.rel (0) target = $region25
    $region24: #{iterative_regression.1} parent=1 // pred_region
      %s47 = ssub.s32 1024, 1024
      %48 = vsyncadd [#allocation6], %s47
      %s49 = sshll.u32 [#allocation7], 4
      %s50 = int_to_ptr.vmem [resolvable:$true] %s49
      %55 = dma.hbm_to_vmem [thread:$0]  %s5, 1024, %s50, [#allocation6], 64, 64, 4
    $region25: #{iterative_regression.1} parent=1 // pred_fallthru
      _
    // Predicated region
    $region26: #{iterative_regression.1} parent=1 // pred_check
      _
    $region27: #{iterative_regression.1} parent=1 // pred_check_branch
      %57 = sbr.rel (0) target = $region29
    $region28: #{iterative_regression.1} parent=1 // pred_region
      _
    $region29: #{iterative_regression.1} parent=1 // pred_fallthru
      _
    // Predicated region
    $region30: #{iterative_regression.1} parent=1 // pred_check
      _
    $region31: #{iterative_regression.1} parent=1 // pred_check_branch
      %59 = sbr.rel (0) target = $region33
    $region32: #{iterative_regression.1} parent=1 // pred_region
      %60 = dma.done [#allocation4], 1024
    $region33: #{iterative_regression.1} parent=1 // pred_fallthru
      _
    // Predicated region
    $region34: #{iterative_regression.1} parent=1 // pred_check
      _
    $region35: #{iterative_regression.1} parent=1 // pred_check_branch
      %62 = sbr.rel (0) target = $region37
    $region36: #{iterative_regression.1} parent=1 // pred_region
      %63 = dma.done [#allocation6], 1024
    $region37: #{iterative_regression.1} parent=1 // pred_fallthru
      _
    // Predicated region
    $region38: #{iterative_regression.1} parent=1 // pred_check
      _
    $region39: #{iterative_regression.1} parent=1 // pred_check_branch
      %65 = sbr.rel (0) target = $region41
    $region40: #{iterative_regression.1} parent=1 // pred_region
      %66 = dma.done [#allocation6], 1024
    $region41: #{iterative_regression.1} parent=1 // pred_fallthru
      _
    %v68 = vld [vmem:[#allocation5] sm:$0xf]
    %v69 = vld [vmem:[#allocation5 + $0x4] sm:$0xf]
    %v70 = vld [vmem:[#allocation5 + $0x8] sm:$0xf]
    %v71 = vld [vmem:[#allocation5 + $0xc] sm:$0xf]
    %v72 = vld [vmem:[#allocation5 + $0x10] sm:$0xf]
    %v73 = vld [vmem:[#allocation5 + $0x14] sm:$0xf]
    %v74 = vld [vmem:[#allocation5 + $0x18] sm:$0xf]
    %v75 = vld [vmem:[#allocation5 + $0x1c] sm:$0xf]
    %v76 = vld [vmem:[#allocation5 + $0x20] sm:$0xf]
    %v77 = vld [vmem:[#allocation5 + $0x24] sm:$0xf]
    %v78 = vld [vmem:[#allocation5 + $0x28] sm:$0xf]
    %v79 = vld [vmem:[#allocation5 + $0x2c] sm:$0xf]
    %v80 = vld [vmem:[#allocation5 + $0x30] sm:$0xf]
    %v81 = vld [vmem:[#allocation5 + $0x34] sm:$0xf]
    %v82 = vld [vmem:[#allocation5 + $0x38] sm:$0xf]
    %v83 = vld [vmem:[#allocation5 + $0x3c] sm:$0xf]
    %v84 = vld [vmem:[#allocation7] sm:$0xf]
    %v85 = vld [vmem:[#allocation7 + $0x4] sm:$0xf]
    %v86 = vld [vmem:[#allocation7 + $0x8] sm:$0xf]
    %v87 = vld [vmem:[#allocation7 + $0xc] sm:$0xf]
    %v88 = vld [vmem:[#allocation7 + $0x10] sm:$0xf]
    %v89 = vld [vmem:[#allocation7 + $0x14] sm:$0xf]
    %v90 = vld [vmem:[#allocation7 + $0x18] sm:$0xf]
    %v91 = vld [vmem:[#allocation7 + $0x1c] sm:$0xf]
    %v92 = vld [vmem:[#allocation7 + $0x20] sm:$0xf]
    %v93 = vld [vmem:[#allocation7 + $0x24] sm:$0xf]
    %v94 = vld [vmem:[#allocation7 + $0x28] sm:$0xf]
    %v95 = vld [vmem:[#allocation7 + $0x2c] sm:$0xf]
    %v96 = vld [vmem:[#allocation7 + $0x30] sm:$0xf]
    %v97 = vld [vmem:[#allocation7 + $0x34] sm:$0xf]
    %v98 = vld [vmem:[#allocation7 + $0x38] sm:$0xf]
    %v99 = vld [vmem:[#allocation7 + $0x3c] sm:$0xf]
    %v100 = vld [vmem:[%s6] sm:$0x1]
    %v101 = vld [vmem:[%s0] sm:$0xf]
    %v102 = vld [vmem:[#allocation3] sm:$0xf]
    %v103 = vld [vmem:[#allocation3 + $0x4] sm:$0xf]
    %v104 = vld [vmem:[#allocation3 + $0x8] sm:$0xf]
    %v105 = vld [vmem:[#allocation3 + $0xc] sm:$0xf]
    %v106 = vld [vmem:[#allocation3 + $0x10] sm:$0xf]
    %v107 = vld [vmem:[#allocation3 + $0x14] sm:$0xf]
    %v108 = vld [vmem:[#allocation3 + $0x18] sm:$0xf]
    %v109 = vld [vmem:[#allocation3 + $0x1c] sm:$0xf]
    %v110 = vld [vmem:[#allocation3 + $0x20] sm:$0xf]
    %v111 = vld [vmem:[#allocation3 + $0x24] sm:$0xf]
    %v112 = vld [vmem:[#allocation3 + $0x28] sm:$0xf]
    %v113 = vld [vmem:[#allocation3 + $0x2c] sm:$0xf]
    %v114 = vld [vmem:[#allocation3 + $0x30] sm:$0xf]
    %v115 = vld [vmem:[#allocation3 + $0x34] sm:$0xf]
    %v116 = vld [vmem:[#allocation3 + $0x38] sm:$0xf]
    %v117 = vld [vmem:[#allocation3 + $0x3c] sm:$0xf]
    %v118 = vld [vmem:[%s4] sm:$0x1]
    %v120 = vlaneseq
    %v121 = vshrl.u32 %v120, 7
    %v122 = vsub.s32 0, %v121
    %v123 = vrot.slane %v118, %v122
    %v141 = vunpack.c.l.b16 %v102
    %v142 = vunpack.c.l.b16 %v103
    %v143 = vunpack.c.l.b16 %v104
    %v144 = vunpack.c.l.b16 %v105
    %v145 = vunpack.c.l.b16 %v106
    %v146 = vunpack.c.l.b16 %v107
    %v147 = vunpack.c.l.b16 %v108
    %v148 = vunpack.c.l.b16 %v109
    %v149 = vunpack.c.l.b16 %v110
    %v150 = vunpack.c.l.b16 %v111
    %v151 = vunpack.c.l.b16 %v112
    %v152 = vunpack.c.l.b16 %v113
    %v153 = vunpack.c.l.b16 %v114
    %v154 = vunpack.c.l.b16 %v115
    %v155 = vunpack.c.l.b16 %v116
    %v156 = vunpack.c.l.b16 %v117
    %v157 = vpack.c.b16 %v142, %v141
    %v158 = vpack.c.b16 %v144, %v143
    %v159 = vpack.c.b16 %v146, %v145
    %v160 = vpack.c.b16 %v148, %v147
    %v161 = vpack.c.b16 %v150, %v149
    %v162 = vpack.c.b16 %v152, %v151
    %v163 = vpack.c.b16 %v154, %v153
    %v164 = vpack.c.b16 %v156, %v155
    %173 = vmatprep.subr.bf16.mxu0 0
    %174 = vmatpush1.bf16.msra.mxu0 %v164
    %175 = vmatprep.subr.bf16.mxu0 0
    %176 = vmatpush1.bf16.msra.mxu0 %v163
    %177 = vmatprep.subr.bf16.mxu0 0
    %178 = vmatpush1.bf16.msra.mxu0 %v162
    %179 = vmatprep.subr.bf16.mxu0 0
    %180 = vmatpush1.bf16.msra.mxu0 %v161
    %181 = vmatprep.subr.bf16.mxu0 0
    %182 = vmatpush1.bf16.msra.mxu0 %v160
    %183 = vmatprep.subr.bf16.mxu0 0
    %184 = vmatpush1.bf16.msra.mxu0 %v159
    %185 = vmatprep.subr.bf16.mxu0 0
    %186 = vmatpush1.bf16.msra.mxu0 %v158
    %187 = vmatprep.subr.bf16.mxu0 0
    %188 = vmatpush1.bf16.msra.mxu0 %v157
    %189 = vmatprep.subr.bf16.mxu0 0
    %190 = vmatpush2.bf16.msra.mxu0 0
    %191 = vmatprep.subr.bf16.mxu0 0
    %192 = vmatpush2.bf16.msra.mxu0 0
    %193 = vmatprep.subr.bf16.mxu0 0
    %194 = vmatpush2.bf16.msra.mxu0 0
    %195 = vmatprep.subr.bf16.mxu0 0
    %196 = vmatpush2.bf16.msra.mxu0 0
    %197 = vmatprep.subr.bf16.mxu0 0
    %198 = vmatpush2.bf16.msra.mxu0 0
    %199 = vmatprep.subr.bf16.mxu0 0
    %200 = vmatpush2.bf16.msra.mxu0 0
    %201 = vmatprep.subr.bf16.mxu0 0
    %202 = vmatpush2.bf16.msra.mxu0 0
    %203 = vmatprep.subr.bf16.mxu0 0
    %204 = vmatpush2.bf16.msra.mxu0 0
    %205 = vmatprep.mubr.bf16.mxu0 0
    %206 = vmatmul.mubr.bf16.gmra.mxu0 %v101
    %v207 = vpop.f32.mrf.mxu0
    %v208 = vadd.f32 %v123, %v207
    %v209 = vpop.f32.mrf.mxu0
    %v210 = vpop.f32.mrf.mxu0
    %v211 = vpop.f32.mrf.mxu0
    %212 = vdwg.mxu0
    %213 = vst [vmem:[#allocation2] sm:$0xff] %v208
    %v214 = vld [vmem:[%s1] sm:$0x1]
    %v216 = vlaneseq
    %v217 = vshrl.u32 %v216, 7
    %v218 = vsub.s32 0, %v217
    %v219 = vrot.slane %v214, %v218
    %v221 = vld [vmem:[#allocation2] sm:$0xff]
    %v222 = vpack.c.bf16 %v219, %v219
    %v239 = vunpack.c.l.b16 %v68
    %v240 = vunpack.c.l.b16 %v69
    %v241 = vunpack.c.l.b16 %v70
    %v242 = vunpack.c.l.b16 %v71
    %v243 = vunpack.c.l.b16 %v72
    %v244 = vunpack.c.l.b16 %v73
    %v245 = vunpack.c.l.b16 %v74
    %v246 = vunpack.c.l.b16 %v75
    %v247 = vunpack.c.l.b16 %v76
    %v248 = vunpack.c.l.b16 %v77
    %v249 = vunpack.c.l.b16 %v78
    %v250 = vunpack.c.l.b16 %v79
    %v251 = vunpack.c.l.b16 %v80
    %v252 = vunpack.c.l.b16 %v81
    %v253 = vunpack.c.l.b16 %v82
    %v254 = vunpack.c.l.b16 %v83
    %v255 = vpack.c.b16 %v240, %v239
    %v256 = vpack.c.b16 %v242, %v241
    %v257 = vpack.c.b16 %v244, %v243
    %v258 = vpack.c.b16 %v246, %v245
    %v259 = vpack.c.b16 %v248, %v247
    %v260 = vpack.c.b16 %v250, %v249
    %v261 = vpack.c.b16 %v252, %v251
    %v262 = vpack.c.b16 %v254, %v253
    %271 = vmatprep.subr.bf16.mxu0 0
    %272 = vmatpush1.bf16.msra.mxu0 %v262
    %273 = vmatprep.subr.bf16.mxu0 0
    %274 = vmatpush1.bf16.msra.mxu0 %v261
    %275 = vmatprep.subr.bf16.mxu0 0
    %276 = vmatpush1.bf16.msra.mxu0 %v260
    %277 = vmatprep.subr.bf16.mxu0 0
    %278 = vmatpush1.bf16.msra.mxu0 %v259
    %279 = vmatprep.subr.bf16.mxu0 0
    %280 = vmatpush1.bf16.msra.mxu0 %v258
    %281 = vmatprep.subr.bf16.mxu0 0
    %282 = vmatpush1.bf16.msra.mxu0 %v257
    %283 = vmatprep.subr.bf16.mxu0 0
    %284 = vmatpush1.bf16.msra.mxu0 %v256
    %285 = vmatprep.subr.bf16.mxu0 0
    %286 = vmatpush1.bf16.msra.mxu0 %v255
    %287 = vmatprep.subr.bf16.mxu0 0
    %288 = vmatpush2.bf16.msra.mxu0 0
    %289 = vmatprep.subr.bf16.mxu0 0
    %290 = vmatpush2.bf16.msra.mxu0 0
    %291 = vmatprep.subr.bf16.mxu0 0
    %292 = vmatpush2.bf16.msra.mxu0 0
    %293 = vmatprep.subr.bf16.mxu0 0
    %294 = vmatpush2.bf16.msra.mxu0 0
    %295 = vmatprep.subr.bf16.mxu0 0
    %296 = vmatpush2.bf16.msra.mxu0 0
    %297 = vmatprep.subr.bf16.mxu0 0
    %298 = vmatpush2.bf16.msra.mxu0 0
    %299 = vmatprep.subr.bf16.mxu0 0
    %300 = vmatpush2.bf16.msra.mxu0 0
    %301 = vmatprep.subr.bf16.mxu0 0
    %302 = vmatpush2.bf16.msra.mxu0 0
    %303 = vmatprep.mubr.bf16.mxu0 0
    %304 = vmatmul.mubr.bf16.gmra.mxu0 %v222
    %v305 = vpop.f32.mrf.mxu0
    %v306 = vadd.f32 0.0, %v305
    %v307 = vpop.f32.mrf.mxu0
    %v308 = vpop.f32.mrf.mxu0
    %v309 = vpop.f32.mrf.mxu0
    %310 = vdwg.mxu0
    %v311 = vadd.f32 %v221, %v306
    %v312 = vmax.f32 %v311, 0.0
    %v313 = vpack.c.bf16 %v312, %v312
    %v315 = vlaneseq
    %v316 = vshrl.u32 %v315, 7
    %v317 = vsub.s32 0, %v316
    %v318 = vrot.slane %v100, %v317
    %v336 = vunpack.c.l.b16 %v84
    %v337 = vunpack.c.l.b16 %v85
    %v338 = vunpack.c.l.b16 %v86
    %v339 = vunpack.c.l.b16 %v87
    %v340 = vunpack.c.l.b16 %v88
    %v341 = vunpack.c.l.b16 %v89
    %v342 = vunpack.c.l.b16 %v90
    %v343 = vunpack.c.l.b16 %v91
    %v344 = vunpack.c.l.b16 %v92
    %v345 = vunpack.c.l.b16 %v93
    %v346 = vunpack.c.l.b16 %v94
    %v347 = vunpack.c.l.b16 %v95
    %v348 = vunpack.c.l.b16 %v96
    %v349 = vunpack.c.l.b16 %v97
    %v350 = vunpack.c.l.b16 %v98
    %v351 = vunpack.c.l.b16 %v99
    %v352 = vpack.c.b16 %v337, %v336
    %v353 = vpack.c.b16 %v339, %v338
    %v354 = vpack.c.b16 %v341, %v340
    %v355 = vpack.c.b16 %v343, %v342
    %v356 = vpack.c.b16 %v345, %v344
    %v357 = vpack.c.b16 %v347, %v346
    %v358 = vpack.c.b16 %v349, %v348
    %v359 = vpack.c.b16 %v351, %v350
    %368 = vmatprep.subr.bf16.mxu0 0
    %369 = vmatpush1.bf16.msra.mxu0 %v359
    %370 = vmatprep.subr.bf16.mxu0 0
    %371 = vmatpush1.bf16.msra.mxu0 %v358
    %372 = vmatprep.subr.bf16.mxu0 0
    %373 = vmatpush1.bf16.msra.mxu0 %v357
    %374 = vmatprep.subr.bf16.mxu0 0
    %375 = vmatpush1.bf16.msra.mxu0 %v356
    %376 = vmatprep.subr.bf16.mxu0 0
    %377 = vmatpush1.bf16.msra.mxu0 %v355
    %378 = vmatprep.subr.bf16.mxu0 0
    %379 = vmatpush1.bf16.msra.mxu0 %v354
    %380 = vmatprep.subr.bf16.mxu0 0
    %381 = vmatpush1.bf16.msra.mxu0 %v353
    %382 = vmatprep.subr.bf16.mxu0 0
    %383 = vmatpush1.bf16.msra.mxu0 %v352
    %384 = vmatprep.subr.bf16.mxu0 0
    %385 = vmatpush2.bf16.msra.mxu0 0
    %386 = vmatprep.subr.bf16.mxu0 0
    %387 = vmatpush2.bf16.msra.mxu0 0
    %388 = vmatprep.subr.bf16.mxu0 0
    %389 = vmatpush2.bf16.msra.mxu0 0
    %390 = vmatprep.subr.bf16.mxu0 0
    %391 = vmatpush2.bf16.msra.mxu0 0
    %392 = vmatprep.subr.bf16.mxu0 0
    %393 = vmatpush2.bf16.msra.mxu0 0
    %394 = vmatprep.subr.bf16.mxu0 0
    %395 = vmatpush2.bf16.msra.mxu0 0
    %396 = vmatprep.subr.bf16.mxu0 0
    %397 = vmatpush2.bf16.msra.mxu0 0
    %398 = vmatprep.subr.bf16.mxu0 0
    %399 = vmatpush2.bf16.msra.mxu0 0
    %400 = vmatprep.mubr.bf16.mxu0 0
    %401 = vmatmul.mubr.bf16.gmra.mxu0 %v313
    %v402 = vpop.f32.mrf.mxu0
    %v403 = vadd.f32 %v318, %v402
    %v404 = vpop.f32.mrf.mxu0
    %v405 = vpop.f32.mrf.mxu0
    %v406 = vpop.f32.mrf.mxu0
    %407 = vdwg.mxu0
    %v408 = vadd.f32 %v219, %v403
    %409 = vst [vmem:[%s7] sm:$0xff] %v408
    %v410 = vld [vmem:[#allocation2] sm:$0xff]
    %v411 = vpack.c.bf16 %v408, %v408
    %412 = vmatprep.subr.bf16.mxu0 0
    %413 = vmatpush1.bf16.msra.mxu0 %v262
    %414 = vmatprep.subr.bf16.mxu0 0
    %415 = vmatpush1.bf16.msra.mxu0 %v261
    %416 = vmatprep.subr.bf16.mxu0 0
    %417 = vmatpush1.bf16.msra.mxu0 %v260
    %418 = vmatprep.subr.bf16.mxu0 0
    %419 = vmatpush1.bf16.msra.mxu0 %v259
    %420 = vmatprep.subr.bf16.mxu0 0
    %421 = vmatpush1.bf16.msra.mxu0 %v258
    %422 = vmatprep.subr.bf16.mxu0 0
    %423 = vmatpush1.bf16.msra.mxu0 %v257
    %424 = vmatprep.subr.bf16.mxu0 0
    %425 = vmatpush1.bf16.msra.mxu0 %v256
    %426 = vmatprep.subr.bf16.mxu0 0
    %427 = vmatpush1.bf16.msra.mxu0 %v255
    %428 = vmatprep.subr.bf16.mxu0 0
    %429 = vmatpush2.bf16.msra.mxu0 0
    %430 = vmatprep.subr.bf16.mxu0 0
    %431 = vmatpush2.bf16.msra.mxu0 0
    %432 = vmatprep.subr.bf16.mxu0 0
    %433 = vmatpush2.bf16.msra.mxu0 0
    %434 = vmatprep.subr.bf16.mxu0 0
    %435 = vmatpush2.bf16.msra.mxu0 0
    %436 = vmatprep.subr.bf16.mxu0 0
    %437 = vmatpush2.bf16.msra.mxu0 0
    %438 = vmatprep.subr.bf16.mxu0 0
    %439 = vmatpush2.bf16.msra.mxu0 0
    %440 = vmatprep.subr.bf16.mxu0 0
    %441 = vmatpush2.bf16.msra.mxu0 0
    %442 = vmatprep.subr.bf16.mxu0 0
    %443 = vmatpush2.bf16.msra.mxu0 0
    %444 = vmatprep.mubr.bf16.mxu0 0
    %445 = vmatmul.mubr.bf16.gmra.mxu0 %v411
    %v446 = vpop.f32.mrf.mxu0
    %v447 = vadd.f32 0.0, %v446
    %v448 = vpop.f32.mrf.mxu0
    %v449 = vpop.f32.mrf.mxu0
    %v450 = vpop.f32.mrf.mxu0
    %451 = vdwg.mxu0
    %v452 = vadd.f32 %v410, %v447
    %v453 = vmax.f32 %v452, 0.0
    %v454 = vpack.c.bf16 %v453, %v453
    %455 = vmatprep.subr.bf16.mxu0 0
    %456 = vmatpush1.bf16.msra.mxu0 %v359
    %457 = vmatprep.subr.bf16.mxu0 0
    %458 = vmatpush1.bf16.msra.mxu0 %v358
    %459 = vmatprep.subr.bf16.mxu0 0
    %460 = vmatpush1.bf16.msra.mxu0 %v357
    %461 = vmatprep.subr.bf16.mxu0 0
    %462 = vmatpush1.bf16.msra.mxu0 %v356
    %463 = vmatprep.subr.bf16.mxu0 0
    %464 = vmatpush1.bf16.msra.mxu0 %v355
    %465 = vmatprep.subr.bf16.mxu0 0
    %466 = vmatpush1.bf16.msra.mxu0 %v354
    %467 = vmatprep.subr.bf16.mxu0 0
    %468 = vmatpush1.bf16.msra.mxu0 %v353
    %469 = vmatprep.subr.bf16.mxu0 0
    %470 = vmatpush1.bf16.msra.mxu0 %v352
    %471 = vmatprep.subr.bf16.mxu0 0
    %472 = vmatpush2.bf16.msra.mxu0 0
    %473 = vmatprep.subr.bf16.mxu0 0
    %474 = vmatpush2.bf16.msra.mxu0 0
    %475 = vmatprep.subr.bf16.mxu0 0
    %476 = vmatpush2.bf16.msra.mxu0 0
    %477 = vmatprep.subr.bf16.mxu0 0
    %478 = vmatpush2.bf16.msra.mxu0 0
    %479 = vmatprep.subr.bf16.mxu0 0
    %480 = vmatpush2.bf16.msra.mxu0 0
    %481 = vmatprep.subr.bf16.mxu0 0
    %482 = vmatpush2.bf16.msra.mxu0 0
    %483 = vmatprep.subr.bf16.mxu0 0
    %484 = vmatpush2.bf16.msra.mxu0 0
    %485 = vmatprep.subr.bf16.mxu0 0
    %486 = vmatpush2.bf16.msra.mxu0 0
    %487 = vmatprep.mubr.bf16.mxu0 0
    %488 = vmatmul.mubr.bf16.gmra.mxu0 %v454
    %v489 = vpop.f32.mrf.mxu0
    %v490 = vadd.f32 %v318, %v489
    %v491 = vpop.f32.mrf.mxu0
    %v492 = vpop.f32.mrf.mxu0
    %v493 = vpop.f32.mrf.mxu0
    %494 = vdwg.mxu0
    %v495 = vadd.f32 %v408, %v490
    %s496 = scalar_lea.vmem %s7, 8
    %497 = vst [vmem:[%s496] sm:$0xff] %v495
    %v498 = vld [vmem:[#allocation2] sm:$0xff]
    %v499 = vpack.c.bf16 %v495, %v495
    %500 = vmatprep.subr.bf16.mxu0 0
    %501 = vmatpush1.bf16.msra.mxu0 %v262
    %502 = vmatprep.subr.bf16.mxu0 0
    %503 = vmatpush1.bf16.msra.mxu0 %v261
    %504 = vmatprep.subr.bf16.mxu0 0
    %505 = vmatpush1.bf16.msra.mxu0 %v260
    %506 = vmatprep.subr.bf16.mxu0 0
    %507 = vmatpush1.bf16.msra.mxu0 %v259
    %508 = vmatprep.subr.bf16.mxu0 0
    %509 = vmatpush1.bf16.msra.mxu0 %v258
    %510 = vmatprep.subr.bf16.mxu0 0
    %511 = vmatpush1.bf16.msra.mxu0 %v257
    %512 = vmatprep.subr.bf16.mxu0 0
    %513 = vmatpush1.bf16.msra.mxu0 %v256
    %514 = vmatprep.subr.bf16.mxu0 0
    %515 = vmatpush1.bf16.msra.mxu0 %v255
    %516 = vmatprep.subr.bf16.mxu0 0
    %517 = vmatpush2.bf16.msra.mxu0 0
    %518 = vmatprep.subr.bf16.mxu0 0
    %519 = vmatpush2.bf16.msra.mxu0 0
    %520 = vmatprep.subr.bf16.mxu0 0
    %521 = vmatpush2.bf16.msra.mxu0 0
    %522 = vmatprep.subr.bf16.mxu0 0
    %523 = vmatpush2.bf16.msra.mxu0 0
    %524 = vmatprep.subr.bf16.mxu0 0
    %525 = vmatpush2.bf16.msra.mxu0 0
    %526 = vmatprep.subr.bf16.mxu0 0
    %527 = vmatpush2.bf16.msra.mxu0 0
    %528 = vmatprep.subr.bf16.mxu0 0
    %529 = vmatpush2.bf16.msra.mxu0 0
    %530 = vmatprep.subr.bf16.mxu0 0
    %531 = vmatpush2.bf16.msra.mxu0 0
    %532 = vmatprep.mubr.bf16.mxu0 0
    %533 = vmatmul.mubr.bf16.gmra.mxu0 %v499
    %v534 = vpop.f32.mrf.mxu0
    %v535 = vadd.f32 0.0, %v534
    %v536 = vpop.f32.mrf.mxu0
    %v537 = vpop.f32.mrf.mxu0
    %v538 = vpop.f32.mrf.mxu0
    %539 = vdwg.mxu0
    %v540 = vadd.f32 %v498, %v535
    %v541 = vmax.f32 %v540, 0.0
    %v542 = vpack.c.bf16 %v541, %v541
    %543 = vmatprep.subr.bf16.mxu0 0
    %544 = vmatpush1.bf16.msra.mxu0 %v359
    %545 = vmatprep.subr.bf16.mxu0 0
    %546 = vmatpush1.bf16.msra.mxu0 %v358
    %547 = vmatprep.subr.bf16.mxu0 0
    %548 = vmatpush1.bf16.msra.mxu0 %v357
    %549 = vmatprep.subr.bf16.mxu0 0
    %550 = vmatpush1.bf16.msra.mxu0 %v356
    %551 = vmatprep.subr.bf16.mxu0 0
    %552 = vmatpush1.bf16.msra.mxu0 %v355
    %553 = vmatprep.subr.bf16.mxu0 0
    %554 = vmatpush1.bf16.msra.mxu0 %v354
    %555 = vmatprep.subr.bf16.mxu0 0
    %556 = vmatpush1.bf16.msra.mxu0 %v353
    %557 = vmatprep.subr.bf16.mxu0 0
    %558 = vmatpush1.bf16.msra.mxu0 %v352
    %559 = vmatprep.subr.bf16.mxu0 0
    %560 = vmatpush2.bf16.msra.mxu0 0
    %561 = vmatprep.subr.bf16.mxu0 0
    %562 = vmatpush2.bf16.msra.mxu0 0
    %563 = vmatprep.subr.bf16.mxu0 0
    %564 = vmatpush2.bf16.msra.mxu0 0
    %565 = vmatprep.subr.bf16.mxu0 0
    %566 = vmatpush2.bf16.msra.mxu0 0
    %567 = vmatprep.subr.bf16.mxu0 0
    %568 = vmatpush2.bf16.msra.mxu0 0
    %569 = vmatprep.subr.bf16.mxu0 0
    %570 = vmatpush2.bf16.msra.mxu0 0
    %571 = vmatprep.subr.bf16.mxu0 0
    %572 = vmatpush2.bf16.msra.mxu0 0
    %573 = vmatprep.subr.bf16.mxu0 0
    %574 = vmatpush2.bf16.msra.mxu0 0
    %575 = vmatprep.mubr.bf16.mxu0 0
    %576 = vmatmul.mubr.bf16.gmra.mxu0 %v542
    %v577 = vpop.f32.mrf.mxu0
    %v578 = vadd.f32 %v318, %v577
    %v579 = vpop.f32.mrf.mxu0
    %v580 = vpop.f32.mrf.mxu0
    %v581 = vpop.f32.mrf.mxu0
    %582 = vdwg.mxu0
    %v583 = vadd.f32 %v495, %v578
    %s584 = scalar_lea.vmem %s7, 16
    %585 = vst [vmem:[%s584] sm:$0xff] %v583
    // Predicated region
    $region42: #{iterative_regression.1} parent=1 // pred_check
      _
    $region43: #{iterative_regression.1} parent=1 // pred_check_branch
      %587 = sbr.rel (0) target = $region45
    $region44: #{iterative_regression.1} parent=1 // pred_region
      _
    $region45: #{iterative_regression.1} parent=1 // pred_fallthru
      _
    // Predicated region
    $region46: #{iterative_regression.1} parent=1 // pred_check
      _
    $region47: #{iterative_regression.1} parent=1 // pred_check_branch
      %589 = sbr.rel (0) target = $region49
    $region48: #{iterative_regression.1} parent=1 // pred_region
      _
    $region49: #{iterative_regression.1} parent=1 // pred_fallthru
      _
    %590 = vsyncpa [#allocation4], 1
    %591 = vsyncpa [#allocation6], 1

</llo_original>
